<compile_context>
chip_gen: v5e
topology: v5e:2x2
jax: 0.10.0
libtpu: 0.0.40
codegen_flags: <defaults>
</compile_context>

<pallas_src>
import functools

import jax
import jax.numpy as jnp
from jax.experimental import pallas as pl
from jax.experimental.pallas import tpu as pltpu

C_OUT = 16                 # conv output channels
KSIZE = 3                  # conv kernel size
SEQ = 20                   # input sequence length (fc1 in = 16 * 20/2 = 160)
POOLED = SEQ // 2          # 10
FLAT = C_OUT * POOLED      # 160
HIDDEN = 64
NUM_CLASSES = 4
OUT_PAD = 128              # lane-dense padded logits width
EO_HALF = 256              # 128-aligned half width of the fused conv weight
EO_W = 2 * EO_HALF         # 512: [W_even | pad | W_odd | pad]
DEFAULT_TB = 2048          # batch tile (multiple of 256 for the MXU)
VMEM_LIMIT = 32 << 20      # explicit scoped-VMEM limit (covers v5e default 16MiB)

assert SEQ % 2 == 0, "MaxPool1d(2) requires an even sequence length"


def eegnet_kernel(x_ref, weo_ref, bc_ref, w1_ref, b1_ref, w2_ref, b2_ref,
                  o_ref):
    """One batch tile: x (TB, SEQ) bf16 -> padded logits (TB, OUT_PAD) bf16."""
    x = x_ref[...]                                               # (TB, SEQ) bf16

    # Fused conv(k=3,pad=1) + maxpool(2) + flatten: one bf16 MXU matmul whose
    # 128-aligned N-halves hold the even / odd pool samples (runs on both
    # 256-wide MXUs; slices below are lane-aligned, no relayout).
    conv = jnp.dot(x, weo_ref[...],
                   preferred_element_type=jnp.float32)           # (TB, 512) f32
    conv_e = conv[:, :FLAT]                                      # even samples
    conv_o = conv[:, EO_HALF:EO_HALF + FLAT]                     # odd samples
    flat = jnp.maximum(jnp.maximum(conv_e, conv_o) + bc_ref[...], 0.0)
    flat = flat.astype(jnp.bfloat16)                             # (TB, 160)

    # fc1 + ReLU (bf16 operands, f32 accumulate)
    h = jnp.maximum(
        jnp.dot(flat, w1_ref[...], preferred_element_type=jnp.float32)
        + b1_ref[...], 0.0).astype(jnp.bfloat16)                 # (TB, 64)

    # fc2 into a lane-dense padded block, stored bf16 (halves writeback bytes).
    logits = (jnp.dot(h, w2_ref[...], preferred_element_type=jnp.float32)
              + b2_ref[...])
    o_ref[...] = logits.astype(jnp.bfloat16)


def prepare_params(params):
    """One-time transformation of torch-layout weights into kernel operands."""
    cw = params["conv1_w"].reshape(C_OUT, KSIZE).astype(jnp.float32)  # (16, 3)
    cb = params["conv1_b"].astype(jnp.float32)                        # (16,)

    # W_even / W_odd: (SEQ, FLAT) with column index = c*POOLED + p (torch
    # flatten order).  conv[b, t, c] = sum_k cw[c, k] * x[b, t + k - 1].
    s = jnp.arange(SEQ)[:, None, None, None]       # (SEQ,1,1,1)
    p = jnp.arange(POOLED)[None, None, :, None]    # (1,1,P,1)
    k = jnp.arange(KSIZE)[None, None, None, :]     # (1,1,1,K)
    taps = cw[None, :, None, :]                    # (1,C,1,K)
    w_even = jnp.sum(jnp.where(s == 2 * p + k - 1, taps, 0.0),
                     axis=-1).reshape(SEQ, FLAT)
    w_odd = jnp.sum(jnp.where(s == 2 * p + k, taps, 0.0),
                    axis=-1).reshape(SEQ, FLAT)
    # Fused [W_even | zero-pad | W_odd | zero-pad] with 128-aligned halves.
    w_eo = (jnp.zeros((SEQ, EO_W), jnp.float32)
            .at[:, :FLAT].set(w_even)
            .at[:, EO_HALF:EO_HALF + FLAT].set(w_odd))
    b_conv = jnp.repeat(cb, POOLED).reshape(1, FLAT)   # bias in c*P+p order

    w1t = params["fc1_w"].T.astype(jnp.float32)        # (160, 64)
    b1 = params["fc1_b"].reshape(1, HIDDEN).astype(jnp.float32)

    w2t = params["fc2_w"].T.astype(jnp.float32)        # (64, C)
    w2p = jnp.zeros((HIDDEN, OUT_PAD), jnp.float32).at[:, :NUM_CLASSES].set(w2t)
    b2p = jnp.zeros((1, OUT_PAD), jnp.float32).at[0, :NUM_CLASSES].set(
        params["fc2_b"].astype(jnp.float32))

    return {
        "w_eo": w_eo.astype(jnp.bfloat16),     # bf16 MXU operands
        "w1t": w1t.astype(jnp.bfloat16),
        "w2p": w2p.astype(jnp.bfloat16),
        "b_conv": b_conv,                      # biases stay f32 (post-accum add)
        "b1": b1,
        "b2p": b2p,
    }


def _round_up(x, m):
    return ((x + m - 1) // m) * m


def _choose_tile(B, tb):
    """Batch tile size: bf16-sublane-legal, padding-minimizing, v7x-friendly."""
    if B <= 256:
        # Tiny batch: one tile; 16 = bf16 sublane packing requirement.
        return max(16, _round_up(B, 16))
    # >= 2 tiles so the "parallel" batch axis spans both v7x TensorCores, and
    # size the tile to minimize zero-padding instead of padding by a full tb.
    n_tiles = max(2, -(-B // tb))
    return _round_up(-(-B // n_tiles), 256)


@functools.partial(jax.jit, static_argnames=("tb",))
def eegnet_forward(x, prep, *, tb=DEFAULT_TB):
    """x: (B, SEQ), prep: output of prepare_params. Returns (B, C) float32."""
    B = x.shape[0]
    x = x.astype(jnp.bfloat16)                 # half the DMA, native MXU operand

    TB = _choose_tile(B, tb)
    B_pad = _round_up(B, TB)
    if B_pad != B:
        x = jnp.pad(x, ((0, B_pad - B), (0, 0)))
    grid = (B_pad // TB,)

    const = lambda i: (0, 0)    # weights: resident, no re-DMA across steps
    flops_per_row = 2 * (SEQ * EO_W + FLAT * HIDDEN + HIDDEN * OUT_PAD)
    weight_bytes = (2 * SEQ * EO_W + 2 * FLAT * HIDDEN + 2 * HIDDEN * OUT_PAD
                    + 4 * (FLAT + HIDDEN + OUT_PAD))
    cost = pl.CostEstimate(
        flops=B_pad * flops_per_row,
        transcendentals=0,
        bytes_accessed=B_pad * 2 * (SEQ + OUT_PAD) + weight_bytes)

    out = pl.pallas_call(
        eegnet_kernel,
        out_shape=jax.ShapeDtypeStruct((B_pad, OUT_PAD), jnp.bfloat16),
        grid=grid,
        in_specs=[
            pl.BlockSpec((TB, SEQ), lambda i: (i, 0)),        # x tile (bf16)
            pl.BlockSpec((SEQ, EO_W), const),                 # fused conv weight
            pl.BlockSpec((1, FLAT), const),                   # conv bias (f32)
            pl.BlockSpec((FLAT, HIDDEN), const),              # fc1 weight^T
            pl.BlockSpec((1, HIDDEN), const),                 # fc1 bias (f32)
            pl.BlockSpec((HIDDEN, OUT_PAD), const),           # fc2 weight^T (padded)
            pl.BlockSpec((1, OUT_PAD), const),                # fc2 bias (padded, f32)
        ],
        out_specs=pl.BlockSpec((TB, OUT_PAD), lambda i: (i, 0)),
        compiler_params=pltpu.CompilerParams(
            dimension_semantics=("parallel",),
            vmem_limit_bytes=VMEM_LIMIT),
        cost_estimate=cost,
    )(x, prep["w_eo"], prep["b_conv"], prep["w1t"], prep["b1"],
      prep["w2p"], prep["b2p"])

    return out[:B, :NUM_CLASSES].astype(jnp.float32)


def ref_forward(x, params):
    """Pure-JAX f32 reference in exact PyTorch (NCL) layout."""
    hi = jax.lax.Precision.HIGHEST
    B, L = x.shape
    cw = params["conv1_w"].reshape(C_OUT, KSIZE)
    cb = params["conv1_b"]
    xp = jnp.pad(x, ((0, 0), (1, 1)))                       # zero padding=1
    conv = sum(xp[:, None, k:k + L] * cw[None, :, k, None] for k in range(KSIZE))
    conv = conv + cb[None, :, None]                         # (B, 16, L)
    act = jnp.maximum(conv, 0.0)
    pooled = act.reshape(B, C_OUT, L // 2, 2).max(axis=-1)  # (B, 16, L/2)
    flat = pooled.reshape(B, -1)                            # (B, 160), c*10+p order
    h = jnp.maximum(
        jnp.dot(flat, params["fc1_w"].T, precision=hi) + params["fc1_b"], 0.0)
    return jnp.dot(h, params["fc2_w"].T, precision=hi) + params["fc2_b"]


def init_params(key):
    ks = jax.random.split(key, 6)
    scale = 0.1
    return {
        "conv1_w": scale * jax.random.normal(ks[0], (C_OUT, 1, KSIZE), jnp.float32),
        "conv1_b": scale * jax.random.normal(ks[1], (C_OUT,), jnp.float32),
        "fc1_w": scale * jax.random.normal(ks[2], (HIDDEN, FLAT), jnp.float32),
        "fc1_b": scale * jax.random.normal(ks[3], (HIDDEN,), jnp.float32),
        "fc2_w": scale * jax.random.normal(ks[4], (NUM_CLASSES, HIDDEN), jnp.float32),
        "fc2_b": scale * jax.random.normal(ks[5], (NUM_CLASSES,), jnp.float32),
    }


if __name__ == "__main__":
    key = jax.random.PRNGKey(0)
    kx, kp = jax.random.split(key)
    B = 2
    x = jax.random.normal(kx, (B, SEQ), jnp.float32)        # (2, 20)
    params = init_params(kp)

    prep = prepare_params(params)                            # one-time weight prep
    out = eegnet_forward(x, prep)
    out = jax.block_until_ready(out)

    ref = ref_forward(x, params)
    assert out.shape == (B, NUM_CLASSES), out.shape
    # bf16 operands / bf16 output: loosened tolerance vs. the f32 reference.
    assert jnp.allclose(out, ref, atol=5e-2, rtol=5e-2), (out, ref)
    print("KERNEL_OK")
</pallas_src>

<mosaic_0001>
module attributes {stable_mosaic.version = 11 : i64} {
  func.func @eegnet_kernel(%arg0: i32, %arg1: memref<16x20xbf16, #tpu.memory_space<vmem>>, %arg2: memref<20x512xbf16, #tpu.memory_space<vmem>>, %arg3: memref<1x160xf32, #tpu.memory_space<vmem>>, %arg4: memref<160x64xbf16, #tpu.memory_space<vmem>>, %arg5: memref<1x64xf32, #tpu.memory_space<vmem>>, %arg6: memref<64x128xbf16, #tpu.memory_space<vmem>>, %arg7: memref<1x128xf32, #tpu.memory_space<vmem>>, %arg8: memref<16x128xbf16, #tpu.memory_space<vmem>>) attributes {dimension_semantics = [#tpu.dimension_semantics<parallel>], iteration_bounds = array<i64: 1>, scalar_prefetch = 0 : i64, scratch_operands = 0 : i64, tpu.core_type = #tpu.core_type<tc>, window_params = [{transform_indices = @transform_0, window_bounds = array<i64: 16, 20>}, {pipeline_mode = #tpu.pipeline_mode<synchronous>, transform_indices = @transform_1, window_bounds = array<i64: 20, 512>}, {pipeline_mode = #tpu.pipeline_mode<synchronous>, transform_indices = @transform_2, window_bounds = array<i64: 1, 160>}, {pipeline_mode = #tpu.pipeline_mode<synchronous>, transform_indices = @transform_3, window_bounds = array<i64: 160, 64>}, {pipeline_mode = #tpu.pipeline_mode<synchronous>, transform_indices = @transform_4, window_bounds = array<i64: 1, 64>}, {pipeline_mode = #tpu.pipeline_mode<synchronous>, transform_indices = @transform_5, window_bounds = array<i64: 64, 128>}, {pipeline_mode = #tpu.pipeline_mode<synchronous>, transform_indices = @transform_6, window_bounds = array<i64: 1, 128>}, {transform_indices = @transform_7, window_bounds = array<i64: 16, 128>}]} {
    %c0 = arith.constant 0 : index
    %c0_0 = arith.constant 0 : index
    %0 = vector.load %arg1[%c0, %c0_0] : memref<16x20xbf16, #tpu.memory_space<vmem>>, vector<16x20xbf16>
    %c0_1 = arith.constant 0 : index
    %c0_2 = arith.constant 0 : index
    %1 = vector.load %arg2[%c0_1, %c0_2] : memref<20x512xbf16, #tpu.memory_space<vmem>>, vector<20x512xbf16>
    %cst = arith.constant dense<0.000000e+00> : vector<16x512xf32>
    %2 = tpu.matmul %0, %1, %cst {dimension_numbers = #tpu.dot_dimension_numbers<[1], [0], [0], [1], [0, 0, 1, 1], [], []>} : vector<16x20xbf16>, vector<20x512xbf16>, vector<16x512xf32> -> vector<16x512xf32>
    %3 = vector.extract_strided_slice %2 {offsets = [0, 0], sizes = [16, 160], strides = [1, 1]} : vector<16x512xf32> to vector<16x160xf32>
    %4 = vector.extract_strided_slice %2 {offsets = [0, 256], sizes = [16, 160], strides = [1, 1]} : vector<16x512xf32> to vector<16x160xf32>
    %5 = arith.maximumf %3, %4 : vector<16x160xf32>
    %c0_3 = arith.constant 0 : index
    %c0_4 = arith.constant 0 : index
    %6 = vector.load %arg3[%c0_3, %c0_4] : memref<1x160xf32, #tpu.memory_space<vmem>>, vector<1x160xf32>
    %7 = vector.broadcast %6 : vector<1x160xf32> to vector<16x160xf32>
    %8 = arith.addf %5, %7 : vector<16x160xf32>
    %cst_5 = arith.constant 0.000000e+00 : f32
    %9 = vector.broadcast %cst_5 : f32 to vector<16x160xf32>
    %10 = arith.maximumf %8, %9 : vector<16x160xf32>
    %11 = arith.truncf %10 : vector<16x160xf32> to vector<16x160xbf16>
    %c0_6 = arith.constant 0 : index
    %c0_7 = arith.constant 0 : index
    %12 = vector.load %arg4[%c0_6, %c0_7] : memref<160x64xbf16, #tpu.memory_space<vmem>>, vector<160x64xbf16>
    %cst_8 = arith.constant dense<0.000000e+00> : vector<16x64xf32>
    %13 = tpu.matmul %11, %12, %cst_8 {dimension_numbers = #tpu.dot_dimension_numbers<[1], [0], [0], [1], [0, 0, 1, 1], [], []>} : vector<16x160xbf16>, vector<160x64xbf16>, vector<16x64xf32> -> vector<16x64xf32>
    %c0_9 = arith.constant 0 : index
    %c0_10 = arith.constant 0 : index
    %14 = vector.load %arg5[%c0_9, %c0_10] : memref<1x64xf32, #tpu.memory_space<vmem>>, vector<1x64xf32>
    %15 = vector.broadcast %14 : vector<1x64xf32> to vector<16x64xf32>
    %16 = arith.addf %13, %15 : vector<16x64xf32>
    %cst_11 = arith.constant 0.000000e+00 : f32
    %17 = vector.broadcast %cst_11 : f32 to vector<16x64xf32>
    %18 = arith.maximumf %16, %17 : vector<16x64xf32>
    %19 = arith.truncf %18 : vector<16x64xf32> to vector<16x64xbf16>
    %c0_12 = arith.constant 0 : index
    %c0_13 = arith.constant 0 : index
    %20 = vector.load %arg6[%c0_12, %c0_13] : memref<64x128xbf16, #tpu.memory_space<vmem>>, vector<64x128xbf16>
    %cst_14 = arith.constant dense<0.000000e+00> : vector<16x128xf32>
    %21 = tpu.matmul %19, %20, %cst_14 {dimension_numbers = #tpu.dot_dimension_numbers<[1], [0], [0], [1], [0, 0, 1, 1], [], []>} : vector<16x64xbf16>, vector<64x128xbf16>, vector<16x128xf32> -> vector<16x128xf32>
    %c0_15 = arith.constant 0 : index
    %c0_16 = arith.constant 0 : index
    %22 = vector.load %arg7[%c0_15, %c0_16] : memref<1x128xf32, #tpu.memory_space<vmem>>, vector<1x128xf32>
    %23 = vector.broadcast %22 : vector<1x128xf32> to vector<16x128xf32>
    %24 = arith.addf %21, %23 : vector<16x128xf32>
    %25 = arith.truncf %24 : vector<16x128xf32> to vector<16x128xbf16>
    %c0_17 = arith.constant 0 : index
    %c0_18 = arith.constant 0 : index
    %26 = vector.load %arg8[%c0_17, %c0_18] : memref<16x128xbf16, #tpu.memory_space<vmem>>, vector<16x128xbf16>
    tpu.vector_store %arg8[%c0_17, %c0_18], %25 {strides = array<i32>} : memref<16x128xbf16, #tpu.memory_space<vmem>>, vector<16x128xbf16>,
    return
  }
  func.func @transform_0(%arg0: i32) -> (i32, i32) {
    %c0_i32 = arith.constant 0 : i32
    %c0_i32_0 = arith.constant 0 : i32
    return %arg0, %c0_i32 : i32, i32
  }
  func.func @transform_1(%arg0: i32) -> (i32, i32) {
    %c0_i32 = arith.constant 0 : i32
    %c0_i32_0 = arith.constant 0 : i32
    %c0_i32_1 = arith.constant 0 : i32
    return %c0_i32, %c0_i32_0 : i32, i32
  }
  func.func @transform_2(%arg0: i32) -> (i32, i32) {
    %c0_i32 = arith.constant 0 : i32
    %c0_i32_0 = arith.constant 0 : i32
    %c0_i32_1 = arith.constant 0 : i32
    return %c0_i32, %c0_i32_0 : i32, i32
  }
  func.func @transform_3(%arg0: i32) -> (i32, i32) {
    %c0_i32 = arith.constant 0 : i32
    %c0_i32_0 = arith.constant 0 : i32
    %c0_i32_1 = arith.constant 0 : i32
    return %c0_i32, %c0_i32_0 : i32, i32
  }
  func.func @transform_4(%arg0: i32) -> (i32, i32) {
    %c0_i32 = arith.constant 0 : i32
    %c0_i32_0 = arith.constant 0 : i32
    %c0_i32_1 = arith.constant 0 : i32
    return %c0_i32, %c0_i32_0 : i32, i32
  }
  func.func @transform_5(%arg0: i32) -> (i32, i32) {
    %c0_i32 = arith.constant 0 : i32
    %c0_i32_0 = arith.constant 0 : i32
    %c0_i32_1 = arith.constant 0 : i32
    return %c0_i32, %c0_i32_0 : i32, i32
  }
  func.func @transform_6(%arg0: i32) -> (i32, i32) {
    %c0_i32 = arith.constant 0 : i32
    %c0_i32_0 = arith.constant 0 : i32
    %c0_i32_1 = arith.constant 0 : i32
    return %c0_i32, %c0_i32_0 : i32, i32
  }
  func.func @transform_7(%arg0: i32) -> (i32, i32) {
    %c0_i32 = arith.constant 0 : i32
    %c0_i32_0 = arith.constant 0 : i32
    return %arg0, %c0_i32 : i32, i32
  }
}

</mosaic_0001>

<llo_original>
// kernel: eegnet_forward.1
$region0: #{eegnet_forward.1}
  #allocation0 [shape = 'u32[]', space=smem, size = 0x4, offset = 0x4, fixed_abs, tag = 'smem constant byte address 0x4 - core index']
  #allocation1 [shape = 'u32[72,128]{1,0:T(1,128)}', space=vmem, size = 0x9000, scoped, tag = 'internal scratch']
  %s0 = inlined_call_operand.vmem [shape: bf16[16,20], index: 0, kind: input, shape index: {}]
  %s1 = inlined_call_operand.vmem [shape: bf16[20,512], index: 1, kind: input, shape index: {}]
  %s2 = inlined_call_operand.vmem [shape: f32[1,160], index: 2, kind: input, shape index: {}]
  %s3 = inlined_call_operand.vmem [shape: bf16[160,64], index: 3, kind: input, shape index: {}]
  %s4 = inlined_call_operand.vmem [shape: f32[1,64], index: 4, kind: input, shape index: {}]
  %s5 = inlined_call_operand.vmem [shape: bf16[64,128], index: 5, kind: input, shape index: {}]
  %s6 = inlined_call_operand.vmem [shape: f32[1,128], index: 6, kind: input, shape index: {}]
  %s7 = inlined_call_operand.vmem [shape: bf16[16,128], index: 7, kind: output, shape index: {}]
  %s8 = sld [smem:[#allocation0]]
  $region38: #{eegnet_forward.1} parent=0
    _
  %s10 = ssub.s32 1, %s8
  %s11 = scalar_select 0, %s10, %s8
  // Predicated region
  $region2: #{eegnet_forward.1} parent=0 // pred_check
    _
  $region3: #{eegnet_forward.1} parent=0 // pred_check_branch
    %13 = sbr.rel (0) target = $region5
  $region4: #{eegnet_forward.1} parent=0 // pred_region
    _
  $region5: #{eegnet_forward.1} parent=0 // pred_fallthru
    _
  // Predicated region
  $region6: #{eegnet_forward.1} parent=0 // pred_check
    _
  $region7: #{eegnet_forward.1} parent=0 // pred_check_branch
    %15 = sbr.rel (0) target = $region9
  $region8: #{eegnet_forward.1} parent=0 // pred_region
    _
  $region9: #{eegnet_forward.1} parent=0 // pred_fallthru
    _
  // Predicated region
  $region10: #{eegnet_forward.1} parent=0 // pred_check
    _
  $region11: #{eegnet_forward.1} parent=0 // pred_check_branch
    %17 = sbr.rel (0) target = $region13
  $region12: #{eegnet_forward.1} parent=0 // pred_region
    _
  $region13: #{eegnet_forward.1} parent=0 // pred_fallthru
    _
  // Predicated region
  $region14: #{eegnet_forward.1} parent=0 // pred_check
    _
  $region15: #{eegnet_forward.1} parent=0 // pred_check_branch
    %19 = sbr.rel (0) target = $region17
  $region16: #{eegnet_forward.1} parent=0 // pred_region
    _
  $region17: #{eegnet_forward.1} parent=0 // pred_fallthru
    _
  // Predicated region
  $region18: #{eegnet_forward.1} parent=0 // pred_check
    _
  $region19: #{eegnet_forward.1} parent=0 // pred_check_branch
    %21 = sbr.rel (0) target = $region21
  $region20: #{eegnet_forward.1} parent=0 // pred_region
    _
  $region21: #{eegnet_forward.1} parent=0 // pred_fallthru
    _
  // Predicated region
  $region22: #{eegnet_forward.1} parent=0 // pred_check
    _
  $region23: #{eegnet_forward.1} parent=0 // pred_check_branch
    %23 = sbr.rel (0) target = $region25
  $region24: #{eegnet_forward.1} parent=0 // pred_region
    _
  $region25: #{eegnet_forward.1} parent=0 // pred_fallthru
    _
  // Predicated region
  $region26: #{eegnet_forward.1} parent=0 // pred_check
    _
  $region27: #{eegnet_forward.1} parent=0 // pred_check_branch
    %25 = sbr.rel (0) target = $region29
  $region28: #{eegnet_forward.1} parent=0 // pred_region
    _
  $region29: #{eegnet_forward.1} parent=0 // pred_fallthru
    _
  %v27 = vld [vmem:[%s0] sm:$0xf]
  %v28 = vld [vmem:[%s0 + $0x4] sm:$0xf]
  %v29 = vld [vmem:[%s1] sm:$0xff]
  %v30 = vld [vmem:[%s1 + $0x8] sm:$0xff]
  %v31 = vld [vmem:[%s1 + $0x10] sm:$0xff]
  %v32 = vld [vmem:[%s1 + $0x18] sm:$0xff]
  %v33 = vld [vmem:[%s1 + $0x20] sm:$0x33]
  %v34 = vld [vmem:[%s1 + $0x28] sm:$0x33]
  %v37 = vunpack.c.l.b16 %v27
  %v38 = vunpack.c.l.b16 %v28
  %v39 = vpack.c.b16 %v38, %v37
  %v46 = vunpack.c.l.b16 %v29
  %v47 = vunpack.c.h.b16 %v29
  %v48 = vunpack.c.l.b16 %v30
  %v49 = vunpack.c.h.b16 %v30
  %v50 = vunpack.c.l.b16 %v31
  %v51 = vunpack.c.h.b16 %v31
  %v52 = vunpack.c.l.b16 %v32
  %v53 = vunpack.c.h.b16 %v32
  %v54 = vunpack.c.l.b16 %v33
  %v55 = vunpack.c.h.b16 %v33
  %v56 = vunpack.c.l.b16 %v34
  %v57 = vunpack.c.h.b16 %v34
  %v58 = vpack.c.b16 %v50, %v46
  %v59 = vpack.c.b16 %v51, %v47
  %v60 = vpack.c.b16 %v52, %v48
  %v61 = vpack.c.b16 %v53, %v49
  %v62 = vpack.c.b16 %v54, %v54
  %v63 = vpack.c.b16 %v55, %v55
  %v64 = vpack.c.b16 %v56, %v56
  %v65 = vpack.c.b16 %v57, %v57
  %vm70 = vcmask 162816
  %v72 = vsel %vm70, %v39, 0
  %vm74 = vcmask 1041408
  %v76 = vsel %vm74, %v62, 0
  %v79 = vsel %vm74, %v63, 0
  %v82 = vsel %vm74, %v64, 0
  %v85 = vsel %vm74, %v65, 0
  %87 = vmatpush.bf16.msra.mxu0 0
  %88 = vmatpush.bf16.msra.mxu0 0
  %89 = vmatpush.bf16.msra.mxu0 0
  %90 = vmatpush.bf16.msra.mxu0 0
  %91 = vmatpush.bf16.msra.mxu0 0
  %92 = vmatpush.bf16.msra.mxu0 0
  %93 = vmatpush.bf16.msra.mxu0 %v76
  %94 = vmatpush.bf16.msra.mxu0 %v58
  %95 = vmatmul.bf16.gmra.mxu0 %v72
  %v96 = vpop.f32.mrf.mxu0
  %v97 = vadd.f32 0.0, %v96
  %v98 = vpop.f32.mrf.mxu0
  %v99 = vadd.f32 0.0, %v98
  %100 = vdwg.mxu0
  %101 = vmatpush.bf16.msra.mxu0 0
  %102 = vmatpush.bf16.msra.mxu0 0
  %103 = vmatpush.bf16.msra.mxu0 0
  %104 = vmatpush.bf16.msra.mxu0 0
  %105 = vmatpush.bf16.msra.mxu0 0
  %106 = vmatpush.bf16.msra.mxu0 0
  %107 = vmatpush.bf16.msra.mxu0 %v79
  %108 = vmatpush.bf16.msra.mxu0 %v59
  %109 = vmatmul.bf16.gmra.mxu0 %v72
  %v110 = vpop.f32.mrf.mxu0
  %v111 = vadd.f32 0.0, %v110
  %v112 = vpop.f32.mrf.mxu0
  %v113 = vadd.f32 0.0, %v112
  %114 = vdwg.mxu0
  %115 = vmatpush.bf16.msra.mxu0 0
  %116 = vmatpush.bf16.msra.mxu0 0
  %117 = vmatpush.bf16.msra.mxu0 0
  %118 = vmatpush.bf16.msra.mxu0 0
  %119 = vmatpush.bf16.msra.mxu0 0
  %120 = vmatpush.bf16.msra.mxu0 0
  %121 = vmatpush.bf16.msra.mxu0 %v82
  %122 = vmatpush.bf16.msra.mxu0 %v60
  %123 = vmatmul.bf16.gmra.mxu0 %v72
  %v124 = vpop.f32.mrf.mxu0
  %v125 = vadd.f32 0.0, %v124
  %v126 = vpop.f32.mrf.mxu0
  %v127 = vadd.f32 0.0, %v126
  %128 = vdwg.mxu0
  %129 = vmatpush.bf16.msra.mxu0 0
  %130 = vmatpush.bf16.msra.mxu0 0
  %131 = vmatpush.bf16.msra.mxu0 0
  %132 = vmatpush.bf16.msra.mxu0 0
  %133 = vmatpush.bf16.msra.mxu0 0
  %134 = vmatpush.bf16.msra.mxu0 0
  %135 = vmatpush.bf16.msra.mxu0 %v85
  %136 = vmatpush.bf16.msra.mxu0 %v61
  %137 = vmatmul.bf16.gmra.mxu0 %v72
  %v138 = vpop.f32.mrf.mxu0
  %v139 = vadd.f32 0.0, %v138
  %v140 = vpop.f32.mrf.mxu0
  %v141 = vadd.f32 0.0, %v140
  %142 = vdwg.mxu0
  %v143 = vmax.f32 %v97, %v125
  %v144 = vmax.f32 %v111, %v139
  %v145 = vmax.f32 %v99, %v127
  %v146 = vmax.f32 %v113, %v141
  %v147 = vld [vmem:[%s2] sm:$0x3]
  %v149 = vperm.slane %v147, 0
  %v150 = vperm.slane %v147, 1
  %v153 = vadd.f32 %v143, %v149
  %v154 = vadd.f32 %v144, %v150
  %v155 = vadd.f32 %v145, %v149
  %v156 = vadd.f32 %v146, %v150
  %v157 = vmax.f32 %v153, 0.0
  %v158 = vmax.f32 %v154, 0.0
  %v159 = vmax.f32 %v155, 0.0
  %v160 = vmax.f32 %v156, 0.0
  %v161 = vpack.c.bf16 %v159, %v157
  %v162 = vpack.c.bf16 %v160, %v158
  %v163 = vld [vmem:[%s3] sm:$0xf]
  %v164 = vld [vmem:[%s3 + $0x4] sm:$0xf]
  %v165 = vld [vmem:[%s3 + $0x8] sm:$0xf]
  %v166 = vld [vmem:[%s3 + $0xc] sm:$0xf]
  %v167 = vld [vmem:[%s3 + $0x10] sm:$0xf]
  %v168 = vld [vmem:[%s3 + $0x14] sm:$0xf]
  %v169 = vld [vmem:[%s3 + $0x18] sm:$0xf]
  %v170 = vld [vmem:[%s3 + $0x1c] sm:$0xf]
  %v171 = vld [vmem:[%s3 + $0x20] sm:$0xf]
  %v172 = vld [vmem:[%s3 + $0x24] sm:$0xf]
  %v173 = vld [vmem:[%s3 + $0x28] sm:$0xf]
  %v174 = vld [vmem:[%s3 + $0x2c] sm:$0xf]
  %v175 = vld [vmem:[%s3 + $0x30] sm:$0xf]
  %v176 = vld [vmem:[%s3 + $0x34] sm:$0xf]
  %v177 = vld [vmem:[%s3 + $0x38] sm:$0xf]
  %v178 = vld [vmem:[%s3 + $0x3c] sm:$0xf]
  %v179 = vld [vmem:[%s3 + $0x40] sm:$0xf]
  %v180 = vld [vmem:[%s3 + $0x44] sm:$0xf]
  %v181 = vld [vmem:[%s3 + $0x48] sm:$0xf]
  %v182 = vld [vmem:[%s3 + $0x4c] sm:$0xf]
  %v183 = vld [vmem:[%s4] sm:$0x1]
  %v185 = vperm.slane %v183, 0
  %v207 = vunpack.c.l.b16 %v163
  %v208 = vunpack.c.l.b16 %v164
  %v209 = vunpack.c.l.b16 %v165
  %v210 = vunpack.c.l.b16 %v166
  %v211 = vunpack.c.l.b16 %v167
  %v212 = vunpack.c.l.b16 %v168
  %v213 = vunpack.c.l.b16 %v169
  %v214 = vunpack.c.l.b16 %v170
  %v215 = vunpack.c.l.b16 %v171
  %v216 = vunpack.c.l.b16 %v172
  %v217 = vunpack.c.l.b16 %v173
  %v218 = vunpack.c.l.b16 %v174
  %v219 = vunpack.c.l.b16 %v175
  %v220 = vunpack.c.l.b16 %v176
  %v221 = vunpack.c.l.b16 %v177
  %v222 = vunpack.c.l.b16 %v178
  %v223 = vunpack.c.l.b16 %v179
  %v224 = vunpack.c.l.b16 %v180
  %v225 = vunpack.c.l.b16 %v181
  %v226 = vunpack.c.l.b16 %v182
  %v227 = vpack.c.b16 %v208, %v207
  %v228 = vpack.c.b16 %v210, %v209
  %v229 = vpack.c.b16 %v212, %v211
  %v230 = vpack.c.b16 %v214, %v213
  %v231 = vpack.c.b16 %v216, %v215
  %v232 = vpack.c.b16 %v218, %v217
  %v233 = vpack.c.b16 %v220, %v219
  %v234 = vpack.c.b16 %v222, %v221
  %v235 = vpack.c.b16 %v224, %v223
  %v236 = vpack.c.b16 %v226, %v225
  %vm247 = vcmask 261120
  %v249 = vsel %vm247, %v162, 0
  %251 = vmatpush.bf16.msra.mxu0 %v234
  %252 = vmatpush.bf16.msra.mxu0 %v233
  %253 = vmatpush.bf16.msra.mxu0 %v232
  %254 = vmatpush.bf16.msra.mxu0 %v231
  %255 = vmatpush.bf16.msra.mxu0 %v230
  %256 = vmatpush.bf16.msra.mxu0 %v229
  %257 = vmatpush.bf16.msra.mxu0 %v228
  %258 = vmatpush.bf16.msra.mxu0 %v227
  %259 = vmatmul.bf16.gmra.mxu0 %v161
  %v260 = vpop.f32.mrf.mxu0
  %v261 = vadd.f32 %v185, %v260
  %v262 = vpop.f32.mrf.mxu0
  %v263 = vadd.f32 %v185, %v262
  %264 = vdwg.mxu0
  %265 = vmatpush.bf16.msra.mxu0 0
  %266 = vmatpush.bf16.msra.mxu0 0
  %267 = vmatpush.bf16.msra.mxu0 0
  %268 = vmatpush.bf16.msra.mxu0 0
  %269 = vmatpush.bf16.msra.mxu0 0
  %270 = vmatpush.bf16.msra.mxu0 0
  %271 = vmatpush.bf16.msra.mxu0 %v236
  %272 = vmatpush.bf16.msra.mxu0 %v235
  %273 = vmatmul.bf16.gmra.mxu0 %v249
  %v274 = vpop.f32.mrf.mxu0
  %v275 = vadd.f32 %v261, %v274
  %v276 = vpop.f32.mrf.mxu0
  %v277 = vadd.f32 %v263, %v276
  %278 = vdwg.mxu0
  %v279 = vmax.f32 %v275, 0.0
  %v280 = vmax.f32 %v277, 0.0
  %v281 = vpack.c.bf16 %v280, %v279
  %v282 = vld [vmem:[%s5] sm:$0xf]
  %v283 = vld [vmem:[%s5 + $0x4] sm:$0xf]
  %v284 = vld [vmem:[%s5 + $0x8] sm:$0xf]
  %v285 = vld [vmem:[%s5 + $0xc] sm:$0xf]
  %v286 = vld [vmem:[%s5 + $0x10] sm:$0xf]
  %v287 = vld [vmem:[%s5 + $0x14] sm:$0xf]
  %v288 = vld [vmem:[%s5 + $0x18] sm:$0xf]
  %v289 = vld [vmem:[%s5 + $0x1c] sm:$0xf]
  %v290 = vld [vmem:[%s6] sm:$0x1]
  %v292 = vperm.slane %v290, 0
  %v302 = vunpack.c.l.b16 %v282
  %v303 = vunpack.c.l.b16 %v283
  %v304 = vunpack.c.l.b16 %v284
  %v305 = vunpack.c.l.b16 %v285
  %v306 = vunpack.c.l.b16 %v286
  %v307 = vunpack.c.l.b16 %v287
  %v308 = vunpack.c.l.b16 %v288
  %v309 = vunpack.c.l.b16 %v289
  %v310 = vpack.c.b16 %v303, %v302
  %v311 = vpack.c.b16 %v305, %v304
  %v312 = vpack.c.b16 %v307, %v306
  %v313 = vpack.c.b16 %v309, %v308
  %vm318 = vcmask 523264
  %v320 = vsel %vm318, %v281, 0
  %322 = vmatpush.bf16.msra.mxu0 0
  %323 = vmatpush.bf16.msra.mxu0 0
  %324 = vmatpush.bf16.msra.mxu0 0
  %325 = vmatpush.bf16.msra.mxu0 0
  %326 = vmatpush.bf16.msra.mxu0 %v313
  %327 = vmatpush.bf16.msra.mxu0 %v312
  %328 = vmatpush.bf16.msra.mxu0 %v311
  %329 = vmatpush.bf16.msra.mxu0 %v310
  %330 = vmatmul.bf16.gmra.mxu0 %v320
  %v331 = vpop.f32.mrf.mxu0
  %v332 = vadd.f32 %v292, %v331
  %v333 = vpop.f32.mrf.mxu0
  %v334 = vadd.f32 %v292, %v333
  %335 = vdwg.mxu0
  %v336 = vpack.c.bf16 %v332, %v332
  %v337 = vpack.c.bf16 %v334, %v334
  %338 = vst [vmem:[%s7] sm:$0xf] %v336
  %339 = vst [vmem:[%s7 + $0x4] sm:$0xf] %v337
  // Predicated region
  $region30: #{eegnet_forward.1} parent=0 // pred_check
    _
  $region31: #{eegnet_forward.1} parent=0 // pred_check_branch
    %341 = sbr.rel (0) target = $region33
  $region32: #{eegnet_forward.1} parent=0 // pred_region
    _
  $region33: #{eegnet_forward.1} parent=0 // pred_fallthru
    _
  // Predicated region
  $region34: #{eegnet_forward.1} parent=0 // pred_check
    _
  $region35: #{eegnet_forward.1} parent=0 // pred_check_branch
    %343 = sbr.rel (0) target = $region37
  $region36: #{eegnet_forward.1} parent=0 // pred_region
    _
  $region37: #{eegnet_forward.1} parent=0 // pred_fallthru
    _

</llo_original>
